<compile_context>
chip_gen: v7x
topology: tpu7x:2x2x1
jax: 0.10.0
libtpu: 0.0.40
codegen_flags: <defaults>
</compile_context>

<pallas_src>
import functools

import jax
import jax.numpy as jnp
from jax.experimental import pallas as pl
from jax.experimental.pallas import tpu as pltpu


def _normalize_f32(x, eps):
    """Row-normalize in f32: x / max(||x||, eps)."""
    x = x.astype(jnp.float32)
    sq = jnp.sum(x * x, axis=-1, keepdims=True)
    return x * jax.lax.rsqrt(jnp.maximum(sq, eps * eps))


def _ntxent_kernel(zia_ref, zja_ref, zib_ref, zjb_ref, out_ref,
                   ai_ref, aj_ref, deni_ref, denj_ref,
                   *, temperature, eps, mm_dtype):
    qi = pl.program_id(0)
    ki = pl.program_id(1)
    n_k = pl.num_programs(1)
    inv_t = 1.0 / temperature

    # ---- init: once per row block (first column step) --------------------
    @pl.when(ki == 0)
    def _init():
        # Normalize the anchor rows once and fold 1/T into them so the MXU
        # produces sim/T directly; keep them resident in VMEM scratch for
        # the whole column sweep.
        ai_ref[...] = (_normalize_f32(zia_ref[...], eps) * inv_t).astype(mm_dtype)
        aj_ref[...] = (_normalize_f32(zja_ref[...], eps) * inv_t).astype(mm_dtype)
        deni_ref[...] = jnp.zeros_like(deni_ref)
        denj_ref[...] = jnp.zeros_like(denj_ref)

    @pl.when((qi == 0) & (ki == 0))
    def _init_out():
        out_ref[0, 0] = jnp.float32(0.0)

    # ---- accumulate: every (row block, column block) step ----------------
    bi = _normalize_f32(zib_ref[...], eps).astype(mm_dtype)
    bj = _normalize_f32(zjb_ref[...], eps).astype(mm_dtype)
    ai = ai_ref[...]
    aj = aj_ref[...]

    # Contract last dims (A @ B.T on the MXU, no explicit transpose pass).
    dn = (((1,), (1,)), ((), ()))
    s_ii = jax.lax.dot_general(ai, bi, dn, preferred_element_type=jnp.float32)
    s_ij = jax.lax.dot_general(ai, bj, dn, preferred_element_type=jnp.float32)
    s_ji = jax.lax.dot_general(aj, bi, dn, preferred_element_type=jnp.float32)
    s_jj = jax.lax.dot_general(aj, bj, dn, preferred_element_type=jnp.float32)

    deni_ref[...] += (jnp.sum(jnp.exp(s_ii), axis=1, keepdims=True)
                      + jnp.sum(jnp.exp(s_ij), axis=1, keepdims=True))
    denj_ref[...] += (jnp.sum(jnp.exp(s_ji), axis=1, keepdims=True)
                      + jnp.sum(jnp.exp(s_jj), axis=1, keepdims=True))

    # ---- finalize: once per row block (last column step) -----------------
    @pl.when(ki == n_k - 1)
    def _finalize():
        a_i = ai_ref[...].astype(jnp.float32)   # == zi_hat / T
        a_j = aj_ref[...].astype(jnp.float32)   # == zj_hat / T
        # Self-similarity / T (== 1/T up to rounding) and positive / T,
        # from cheap (TB, D) row dots on the VPU.
        self_i = temperature * jnp.sum(a_i * a_i, axis=-1, keepdims=True)
        self_j = temperature * jnp.sum(a_j * a_j, axis=-1, keepdims=True)
        pos = temperature * jnp.sum(a_i * a_j, axis=-1, keepdims=True)
        li = jnp.log(deni_ref[...] - jnp.exp(self_i)) - pos
        lj = jnp.log(denj_ref[...] - jnp.exp(self_j)) - pos
        out_ref[0, 0] += jnp.sum(li) + jnp.sum(lj)


def _pick_block_rows(n):
    # Largest MXU/layout-friendly row tile that divides the batch.
    # 256 is MXU-aligned on v6e/v7x and keeps per-step VMEM small enough
    # for v7x's 64 MiB VMEM; v5e (4x128^2 MXU) is also well served.
    for t in (256, 128, 64, 32, 16, 8):
        if n % t == 0:
            return t
    return n   # tiny / odd batch: single full-extent block


def ntxent_loss(z_i, z_j, temperature=1.0, block_rows=None):
    """Pallas TPU implementation of TestLoss.forward (NT-Xent loss)."""
    assert z_i.shape == z_j.shape and z_i.ndim == 2
    n, d = z_i.shape
    tb = _pick_block_rows(n) if block_rows is None else int(block_rows)
    assert n % tb == 0 and (tb % 8 == 0 or tb == n), (n, tb)
    grid = (n // tb, n // tb)

    # bf16 inputs feed the MXU natively; accumulation / exp / log stay in f32.
    mm_dtype = jnp.bfloat16 if z_i.dtype == jnp.bfloat16 else jnp.float32

    kernel = functools.partial(
        _ntxent_kernel,
        temperature=float(temperature),
        eps=1e-8,
        mm_dtype=mm_dtype,
    )

    row_spec = pl.BlockSpec((tb, d), lambda qi, ki: (qi, 0))   # anchor rows
    col_spec = pl.BlockSpec((tb, d), lambda qi, ki: (ki, 0))   # key rows

    out = pl.pallas_call(
        kernel,
        out_shape=jax.ShapeDtypeStruct((1, 1), jnp.float32),
        grid=grid,
        # z_i / z_j are passed twice (anchor view + key view) so no
        # HBM-level concatenate of [z_i; z_j] is ever materialized; the
        # Pallas pipeline skips re-DMA of the anchor blocks while qi is
        # unchanged across the inner ki sweep.
        in_specs=[row_spec, row_spec, col_spec, col_spec],
        out_specs=pl.BlockSpec(memory_space=pltpu.MemorySpace.SMEM),
        scratch_shapes=[
            pltpu.VMEM((tb, d), mm_dtype),      # normalized, 1/T-scaled z_i anchors
            pltpu.VMEM((tb, d), mm_dtype),      # normalized, 1/T-scaled z_j anchors
            pltpu.VMEM((tb, 1), jnp.float32),   # denominator accumulator (z_i anchors)
            pltpu.VMEM((tb, 1), jnp.float32),   # denominator accumulator (z_j anchors)
        ],
        compiler_params=pltpu.CompilerParams(
            # Scalar output is revisited (accumulated) along both grid axes.
            dimension_semantics=("arbitrary", "arbitrary"),
        ),
    )(z_i, z_j, z_i, z_j)
    return out[0, 0] / (2.0 * n)


def _ntxent_reference(z_i, z_j, temperature=1.0):
    """Pure-JAX reference mirroring the PyTorch module."""
    n = z_i.shape[0]
    z = jnp.concatenate([z_i, z_j], axis=0).astype(jnp.float32)
    norm = jnp.linalg.norm(z, axis=-1, keepdims=True)
    sim = (z @ z.T) / jnp.maximum(norm * norm.T, 1e-8)
    m = 2 * n
    pos = jnp.concatenate(
        [jnp.diagonal(sim, offset=n), jnp.diagonal(sim, offset=-n)], axis=0
    )
    mask = 1.0 - jnp.eye(m, dtype=jnp.float32)
    numerator = jnp.exp(pos / temperature)
    denominator = jnp.sum(mask * jnp.exp(sim / temperature), axis=1)
    return jnp.sum(-jnp.log(numerator / denominator)) / (2 * n)


if __name__ == "__main__":
    key = jax.random.PRNGKey(0)
    k1, k2, k3, k4 = jax.random.split(key, 4)

    # Small shape consistent with the module: a batch of feature vectors.
    batch, hidden = 4, 32
    z_i = jax.random.normal(k1, (batch, hidden), dtype=jnp.float32)
    z_j = jax.random.normal(k2, (batch, hidden), dtype=jnp.float32)

    loss = ntxent_loss(z_i, z_j, temperature=1.0)
    jax.block_until_ready(loss)
    ref = _ntxent_reference(z_i, z_j, temperature=1.0)
    assert jnp.allclose(loss, ref, rtol=1e-5, atol=1e-5), (loss, ref)

    # Exercise the multi-block tiled path and the 1/T folding.
    batch2, hidden2 = 16, 32
    z_i2 = jax.random.normal(k3, (batch2, hidden2), dtype=jnp.float32)
    z_j2 = jax.random.normal(k4, (batch2, hidden2), dtype=jnp.float32)
    loss2 = ntxent_loss(z_i2, z_j2, temperature=0.5, block_rows=8)
    jax.block_until_ready(loss2)
    ref2 = _ntxent_reference(z_i2, z_j2, temperature=0.5)
    assert jnp.allclose(loss2, ref2, rtol=1e-5, atol=1e-5), (loss2, ref2)

    print("KERNEL_OK")
</pallas_src>

<mosaic_0001>
module attributes {stable_mosaic.version = 11 : i64} {
  func.func @_ntxent_kernel(%arg0: i32, %arg1: i32, %arg2: memref<4x32xf32, #tpu.memory_space<vmem>>, %arg3: memref<4x32xf32, #tpu.memory_space<vmem>>, %arg4: memref<4x32xf32, #tpu.memory_space<vmem>>, %arg5: memref<4x32xf32, #tpu.memory_space<vmem>>, %arg6: memref<1x1xf32, #tpu.memory_space<smem>>, %arg7: memref<4x32xf32, #tpu.memory_space<vmem>>, %arg8: memref<4x32xf32, #tpu.memory_space<vmem>>, %arg9: memref<4x1xf32, #tpu.memory_space<vmem>>, %arg10: memref<4x1xf32, #tpu.memory_space<vmem>>) attributes {dimension_semantics = [#tpu.dimension_semantics<arbitrary>, #tpu.dimension_semantics<arbitrary>], iteration_bounds = array<i64: 1, 1>, scalar_prefetch = 0 : i64, scratch_operands = 4 : i64, tpu.core_type = #tpu.core_type<tc>, window_params = [{transform_indices = @transform_0, window_bounds = array<i64: 4, 32>}, {transform_indices = @transform_1, window_bounds = array<i64: 4, 32>}, {transform_indices = @transform_2, window_bounds = array<i64: 4, 32>}, {transform_indices = @transform_3, window_bounds = array<i64: 4, 32>}, {transform_indices = @transform_4, window_bounds = array<i64: 1, 1>}]} {
    %c0_i32 = arith.constant 0 : i32
    %0 = arith.cmpi eq, %arg1, %c0_i32 : i32
    %1 = arith.extui %0 : i1 to i32
    %c0_i32_0 = arith.constant 0 : i32
    %2 = arith.cmpi ne, %1, %c0_i32_0 : i32
    scf.if %2 {
      %c0_32 = arith.constant 0 : index
      %c0_33 = arith.constant 0 : index
      %55 = vector.load %arg2[%c0_32, %c0_33] : memref<4x32xf32, #tpu.memory_space<vmem>>, vector<4x32xf32>
      %56 = arith.mulf %55, %55 : vector<4x32xf32>
      %cst_34 = arith.constant dense<0.000000e+00> : vector<4xf32>
      %57 = vector.multi_reduction <add>, %56, %cst_34 [1] : vector<4x32xf32> to vector<4xf32>
      %58 = vector.shape_cast %57 : vector<4xf32> to vector<4x1xf32>
      %cst_35 = arith.constant 1.000000e-16 : f32
      %59 = vector.broadcast %cst_35 : f32 to vector<4x1xf32>
      %60 = arith.maximumf %58, %59 : vector<4x1xf32>
      %61 = math.rsqrt %60 : vector<4x1xf32>
      %62 = vector.broadcast %61 : vector<4x1xf32> to vector<4x32xf32>
      %63 = arith.mulf %55, %62 : vector<4x32xf32>
      %cst_36 = arith.constant 1.000000e+00 : f32
      %64 = vector.broadcast %cst_36 : f32 to vector<4x32xf32>
      %65 = arith.mulf %63, %64 : vector<4x32xf32>
      %c0_37 = arith.constant 0 : index
      %c0_38 = arith.constant 0 : index
      %66 = vector.load %arg7[%c0_37, %c0_38] : memref<4x32xf32, #tpu.memory_space<vmem>>, vector<4x32xf32>
      tpu.vector_store %arg7[%c0_37, %c0_38], %65 {strides = array<i32>} : memref<4x32xf32, #tpu.memory_space<vmem>>, vector<4x32xf32>,
      %c0_39 = arith.constant 0 : index
      %c0_40 = arith.constant 0 : index
      %67 = vector.load %arg3[%c0_39, %c0_40] : memref<4x32xf32, #tpu.memory_space<vmem>>, vector<4x32xf32>
      %68 = arith.mulf %67, %67 : vector<4x32xf32>
      %cst_41 = arith.constant dense<0.000000e+00> : vector<4xf32>
      %69 = vector.multi_reduction <add>, %68, %cst_41 [1] : vector<4x32xf32> to vector<4xf32>
      %70 = vector.shape_cast %69 : vector<4xf32> to vector<4x1xf32>
      %cst_42 = arith.constant 1.000000e-16 : f32
      %71 = vector.broadcast %cst_42 : f32 to vector<4x1xf32>
      %72 = arith.maximumf %70, %71 : vector<4x1xf32>
      %73 = math.rsqrt %72 : vector<4x1xf32>
      %74 = vector.broadcast %73 : vector<4x1xf32> to vector<4x32xf32>
      %75 = arith.mulf %67, %74 : vector<4x32xf32>
      %cst_43 = arith.constant 1.000000e+00 : f32
      %76 = vector.broadcast %cst_43 : f32 to vector<4x32xf32>
      %77 = arith.mulf %75, %76 : vector<4x32xf32>
      %c0_44 = arith.constant 0 : index
      %c0_45 = arith.constant 0 : index
      %78 = vector.load %arg8[%c0_44, %c0_45] : memref<4x32xf32, #tpu.memory_space<vmem>>, vector<4x32xf32>
      tpu.vector_store %arg8[%c0_44, %c0_45], %77 {strides = array<i32>} : memref<4x32xf32, #tpu.memory_space<vmem>>, vector<4x32xf32>,
      %cst_46 = arith.constant 0.000000e+00 : f32
      %79 = vector.broadcast %cst_46 : f32 to vector<4x1xf32>
      %c0_47 = arith.constant 0 : index
      %c0_48 = arith.constant 0 : index
      %80 = vector.load %arg9[%c0_47, %c0_48] : memref<4x1xf32, #tpu.memory_space<vmem>>, vector<4x1xf32>
      tpu.vector_store %arg9[%c0_47, %c0_48], %79 {strides = array<i32>} : memref<4x1xf32, #tpu.memory_space<vmem>>, vector<4x1xf32>,
      %cst_49 = arith.constant 0.000000e+00 : f32
      %81 = vector.broadcast %cst_49 : f32 to vector<4x1xf32>
      %c0_50 = arith.constant 0 : index
      %c0_51 = arith.constant 0 : index
      %82 = vector.load %arg10[%c0_50, %c0_51] : memref<4x1xf32, #tpu.memory_space<vmem>>, vector<4x1xf32>
      tpu.vector_store %arg10[%c0_50, %c0_51], %81 {strides = array<i32>} : memref<4x1xf32, #tpu.memory_space<vmem>>, vector<4x1xf32>,
    } else {
    }
    %c0_i32_1 = arith.constant 0 : i32
    %3 = arith.cmpi eq, %arg0, %c0_i32_1 : i32
    %c0_i32_2 = arith.constant 0 : i32
    %4 = arith.cmpi eq, %arg1, %c0_i32_2 : i32
    %5 = arith.andi %3, %4 : i1
    %6 = arith.extui %5 : i1 to i32
    %c0_i32_3 = arith.constant 0 : i32
    %7 = arith.cmpi ne, %6, %c0_i32_3 : i32
    scf.if %7 {
      %cst_32 = arith.constant 0.000000e+00 : f32
      %c0_33 = arith.constant 0 : index
      %c0_34 = arith.constant 0 : index
      %55 = memref.load %arg6[%c0_33, %c0_34] : memref<1x1xf32, #tpu.memory_space<smem>>
      memref.store %cst_32, %arg6[%c0_33, %c0_34] : memref<1x1xf32, #tpu.memory_space<smem>>
    } else {
    }
    %c0 = arith.constant 0 : index
    %c0_4 = arith.constant 0 : index
    %8 = vector.load %arg4[%c0, %c0_4] : memref<4x32xf32, #tpu.memory_space<vmem>>, vector<4x32xf32>
    %9 = arith.mulf %8, %8 : vector<4x32xf32>
    %cst = arith.constant dense<0.000000e+00> : vector<4xf32>
    %10 = vector.multi_reduction <add>, %9, %cst [1] : vector<4x32xf32> to vector<4xf32>
    %11 = vector.shape_cast %10 : vector<4xf32> to vector<4x1xf32>
    %cst_5 = arith.constant 1.000000e-16 : f32
    %12 = vector.broadcast %cst_5 : f32 to vector<4x1xf32>
    %13 = arith.maximumf %11, %12 : vector<4x1xf32>
    %14 = math.rsqrt %13 : vector<4x1xf32>
    %15 = vector.broadcast %14 : vector<4x1xf32> to vector<4x32xf32>
    %16 = arith.mulf %8, %15 : vector<4x32xf32>
    %c0_6 = arith.constant 0 : index
    %c0_7 = arith.constant 0 : index
    %17 = vector.load %arg5[%c0_6, %c0_7] : memref<4x32xf32, #tpu.memory_space<vmem>>, vector<4x32xf32>
    %18 = arith.mulf %17, %17 : vector<4x32xf32>
    %cst_8 = arith.constant dense<0.000000e+00> : vector<4xf32>
    %19 = vector.multi_reduction <add>, %18, %cst_8 [1] : vector<4x32xf32> to vector<4xf32>
    %20 = vector.shape_cast %19 : vector<4xf32> to vector<4x1xf32>
    %cst_9 = arith.constant 1.000000e-16 : f32
    %21 = vector.broadcast %cst_9 : f32 to vector<4x1xf32>
    %22 = arith.maximumf %20, %21 : vector<4x1xf32>
    %23 = math.rsqrt %22 : vector<4x1xf32>
    %24 = vector.broadcast %23 : vector<4x1xf32> to vector<4x32xf32>
    %25 = arith.mulf %17, %24 : vector<4x32xf32>
    %c0_10 = arith.constant 0 : index
    %c0_11 = arith.constant 0 : index
    %26 = vector.load %arg7[%c0_10, %c0_11] : memref<4x32xf32, #tpu.memory_space<vmem>>, vector<4x32xf32>
    %c0_12 = arith.constant 0 : index
    %c0_13 = arith.constant 0 : index
    %27 = vector.load %arg8[%c0_12, %c0_13] : memref<4x32xf32, #tpu.memory_space<vmem>>, vector<4x32xf32>
    %cst_14 = arith.constant dense<0.000000e+00> : vector<4x4xf32>
    %28 = tpu.matmul %26, %16, %cst_14 {dimension_numbers = #tpu.dot_dimension_numbers<[1], [1], [0], [0], [0, 0, 1, 0], [], []>} : vector<4x32xf32>, vector<4x32xf32>, vector<4x4xf32> -> vector<4x4xf32>
    %cst_15 = arith.constant dense<0.000000e+00> : vector<4x4xf32>
    %29 = tpu.matmul %26, %25, %cst_15 {dimension_numbers = #tpu.dot_dimension_numbers<[1], [1], [0], [0], [0, 0, 1, 0], [], []>} : vector<4x32xf32>, vector<4x32xf32>, vector<4x4xf32> -> vector<4x4xf32>
    %cst_16 = arith.constant dense<0.000000e+00> : vector<4x4xf32>
    %30 = tpu.matmul %27, %16, %cst_16 {dimension_numbers = #tpu.dot_dimension_numbers<[1], [1], [0], [0], [0, 0, 1, 0], [], []>} : vector<4x32xf32>, vector<4x32xf32>, vector<4x4xf32> -> vector<4x4xf32>
    %cst_17 = arith.constant dense<0.000000e+00> : vector<4x4xf32>
    %31 = tpu.matmul %27, %25, %cst_17 {dimension_numbers = #tpu.dot_dimension_numbers<[1], [1], [0], [0], [0, 0, 1, 0], [], []>} : vector<4x32xf32>, vector<4x32xf32>, vector<4x4xf32> -> vector<4x4xf32>
    %c0_18 = arith.constant 0 : index
    %c0_19 = arith.constant 0 : index
    %32 = vector.load %arg9[%c0_18, %c0_19] : memref<4x1xf32, #tpu.memory_space<vmem>>, vector<4x1xf32>
    %33 = math.exp %28 : vector<4x4xf32>
    %cst_20 = arith.constant dense<0.000000e+00> : vector<4xf32>
    %34 = vector.multi_reduction <add>, %33, %cst_20 [1] : vector<4x4xf32> to vector<4xf32>
    %35 = vector.shape_cast %34 : vector<4xf32> to vector<4x1xf32>
    %36 = math.exp %29 : vector<4x4xf32>
    %cst_21 = arith.constant dense<0.000000e+00> : vector<4xf32>
    %37 = vector.multi_reduction <add>, %36, %cst_21 [1] : vector<4x4xf32> to vector<4xf32>
    %38 = vector.shape_cast %37 : vector<4xf32> to vector<4x1xf32>
    %39 = arith.addf %35, %38 : vector<4x1xf32>
    %40 = arith.addf %32, %39 : vector<4x1xf32>
    %c0_22 = arith.constant 0 : index
    %c0_23 = arith.constant 0 : index
    %41 = vector.load %arg9[%c0_22, %c0_23] : memref<4x1xf32, #tpu.memory_space<vmem>>, vector<4x1xf32>
    tpu.vector_store %arg9[%c0_22, %c0_23], %40 {strides = array<i32>} : memref<4x1xf32, #tpu.memory_space<vmem>>, vector<4x1xf32>,
    %c0_24 = arith.constant 0 : index
    %c0_25 = arith.constant 0 : index
    %42 = vector.load %arg10[%c0_24, %c0_25] : memref<4x1xf32, #tpu.memory_space<vmem>>, vector<4x1xf32>
    %43 = math.exp %30 : vector<4x4xf32>
    %cst_26 = arith.constant dense<0.000000e+00> : vector<4xf32>
    %44 = vector.multi_reduction <add>, %43, %cst_26 [1] : vector<4x4xf32> to vector<4xf32>
    %45 = vector.shape_cast %44 : vector<4xf32> to vector<4x1xf32>
    %46 = math.exp %31 : vector<4x4xf32>
    %cst_27 = arith.constant dense<0.000000e+00> : vector<4xf32>
    %47 = vector.multi_reduction <add>, %46, %cst_27 [1] : vector<4x4xf32> to vector<4xf32>
    %48 = vector.shape_cast %47 : vector<4xf32> to vector<4x1xf32>
    %49 = arith.addf %45, %48 : vector<4x1xf32>
    %50 = arith.addf %42, %49 : vector<4x1xf32>
    %c0_28 = arith.constant 0 : index
    %c0_29 = arith.constant 0 : index
    %51 = vector.load %arg10[%c0_28, %c0_29] : memref<4x1xf32, #tpu.memory_space<vmem>>, vector<4x1xf32>
    tpu.vector_store %arg10[%c0_28, %c0_29], %50 {strides = array<i32>} : memref<4x1xf32, #tpu.memory_space<vmem>>, vector<4x1xf32>,
    %c0_i32_30 = arith.constant 0 : i32
    %52 = arith.cmpi eq, %arg1, %c0_i32_30 : i32
    %53 = arith.extui %52 : i1 to i32
    %c0_i32_31 = arith.constant 0 : i32
    %54 = arith.cmpi ne, %53, %c0_i32_31 : i32
    scf.if %54 {
      %c0_32 = arith.constant 0 : index
      %c0_33 = arith.constant 0 : index
      %55 = vector.load %arg7[%c0_32, %c0_33] : memref<4x32xf32, #tpu.memory_space<vmem>>, vector<4x32xf32>
      %c0_34 = arith.constant 0 : index
      %c0_35 = arith.constant 0 : index
      %56 = vector.load %arg8[%c0_34, %c0_35] : memref<4x32xf32, #tpu.memory_space<vmem>>, vector<4x32xf32>
      %57 = arith.mulf %55, %55 : vector<4x32xf32>
      %cst_36 = arith.constant dense<0.000000e+00> : vector<4xf32>
      %58 = vector.multi_reduction <add>, %57, %cst_36 [1] : vector<4x32xf32> to vector<4xf32>
      %59 = vector.shape_cast %58 : vector<4xf32> to vector<4x1xf32>
      %cst_37 = arith.constant 1.000000e+00 : f32
      %60 = vector.broadcast %cst_37 : f32 to vector<4x1xf32>
      %61 = arith.mulf %60, %59 : vector<4x1xf32>
      %62 = arith.mulf %56, %56 : vector<4x32xf32>
      %cst_38 = arith.constant dense<0.000000e+00> : vector<4xf32>
      %63 = vector.multi_reduction <add>, %62, %cst_38 [1] : vector<4x32xf32> to vector<4xf32>
      %64 = vector.shape_cast %63 : vector<4xf32> to vector<4x1xf32>
      %cst_39 = arith.constant 1.000000e+00 : f32
      %65 = vector.broadcast %cst_39 : f32 to vector<4x1xf32>
      %66 = arith.mulf %65, %64 : vector<4x1xf32>
      %67 = arith.mulf %55, %56 : vector<4x32xf32>
      %cst_40 = arith.constant dense<0.000000e+00> : vector<4xf32>
      %68 = vector.multi_reduction <add>, %67, %cst_40 [1] : vector<4x32xf32> to vector<4xf32>
      %69 = vector.shape_cast %68 : vector<4xf32> to vector<4x1xf32>
      %cst_41 = arith.constant 1.000000e+00 : f32
      %70 = vector.broadcast %cst_41 : f32 to vector<4x1xf32>
      %71 = arith.mulf %70, %69 : vector<4x1xf32>
      %c0_42 = arith.constant 0 : index
      %c0_43 = arith.constant 0 : index
      %72 = vector.load %arg9[%c0_42, %c0_43] : memref<4x1xf32, #tpu.memory_space<vmem>>, vector<4x1xf32>
      %73 = math.exp %61 : vector<4x1xf32>
      %74 = arith.subf %72, %73 : vector<4x1xf32>
      %75 = math.log %74 : vector<4x1xf32>
      %76 = arith.subf %75, %71 : vector<4x1xf32>
      %c0_44 = arith.constant 0 : index
      %c0_45 = arith.constant 0 : index
      %77 = vector.load %arg10[%c0_44, %c0_45] : memref<4x1xf32, #tpu.memory_space<vmem>>, vector<4x1xf32>
      %78 = math.exp %66 : vector<4x1xf32>
      %79 = arith.subf %77, %78 : vector<4x1xf32>
      %80 = math.log %79 : vector<4x1xf32>
      %81 = arith.subf %80, %71 : vector<4x1xf32>
      %c0_46 = arith.constant 0 : index
      %c0_47 = arith.constant 0 : index
      %82 = memref.load %arg6[%c0_46, %c0_47] : memref<1x1xf32, #tpu.memory_space<smem>>
      %83 = vector.shape_cast %76 : vector<4x1xf32> to vector<1x4x1xf32>
      %cst_48 = arith.constant dense<0.000000e+00> : vector<1xf32>
      %84 = vector.multi_reduction <add>, %83, %cst_48 [1, 2] : vector<1x4x1xf32> to vector<1xf32>
      %85 = vector.shape_cast %84 : vector<1xf32> to vector<1x1x1xf32>
      %86 = vector.extract %85[0, 0, 0] : f32 from vector<1x1x1xf32>
      %87 = vector.shape_cast %81 : vector<4x1xf32> to vector<1x4x1xf32>
      %cst_49 = arith.constant dense<0.000000e+00> : vector<1xf32>
      %88 = vector.multi_reduction <add>, %87, %cst_49 [1, 2] : vector<1x4x1xf32> to vector<1xf32>
      %89 = vector.shape_cast %88 : vector<1xf32> to vector<1x1x1xf32>
      %90 = vector.extract %89[0, 0, 0] : f32 from vector<1x1x1xf32>
      %91 = arith.addf %86, %90 : f32
      %92 = arith.addf %82, %91 : f32
      %c0_50 = arith.constant 0 : index
      %c0_51 = arith.constant 0 : index
      %93 = memref.load %arg6[%c0_50, %c0_51] : memref<1x1xf32, #tpu.memory_space<smem>>
      memref.store %92, %arg6[%c0_50, %c0_51] : memref<1x1xf32, #tpu.memory_space<smem>>
    } else {
    }
    return
  }
  func.func @transform_0(%arg0: i32, %arg1: i32) -> (i32, i32) {
    %c0_i32 = arith.constant 0 : i32
    %c0_i32_0 = arith.constant 0 : i32
    return %arg0, %c0_i32 : i32, i32
  }
  func.func @transform_1(%arg0: i32, %arg1: i32) -> (i32, i32) {
    %c0_i32 = arith.constant 0 : i32
    %c0_i32_0 = arith.constant 0 : i32
    return %arg0, %c0_i32 : i32, i32
  }
  func.func @transform_2(%arg0: i32, %arg1: i32) -> (i32, i32) {
    %c0_i32 = arith.constant 0 : i32
    %c0_i32_0 = arith.constant 0 : i32
    return %arg1, %c0_i32 : i32, i32
  }
  func.func @transform_3(%arg0: i32, %arg1: i32) -> (i32, i32) {
    %c0_i32 = arith.constant 0 : i32
    %c0_i32_0 = arith.constant 0 : i32
    return %arg1, %c0_i32 : i32, i32
  }
  func.func @transform_4(%arg0: i32, %arg1: i32) -> (i32, i32) {
    %c0_i32 = arith.constant 0 : i32
    %c0_i32_0 = arith.constant 0 : i32
    %c0_i32_1 = arith.constant 0 : i32
    return %c0_i32, %c0_i32_0 : i32, i32
  }
}

</mosaic_0001>

<llo_original>
// kernel: tpu_custom_call.1
$region0: #{tpu_custom_call.1}
  #allocation0 [shape = 'u32[]', space=smem, size = 0x4, offset = 0x4, fixed_abs, tag = 'smem constant byte address 0x4 - core index']
  #allocation1 [shape = 'u32[144,128]{1,0:T(1,128)}', space=vmem, size = 0x12000, scoped, tag = 'internal scratch']
  #allocation2 [shape = 'f32[4,32]{1,0:T(4,128)}', space=vmem, size = 0x800, scoped, tag = 'scratch operand']
  #allocation3 [shape = 'f32[4,32]{1,0:T(4,128)}', space=vmem, size = 0x800, scoped, tag = 'scratch operand']
  #allocation4 [shape = 'f32[4,1]{1,0:T(4,128)}', space=vmem, size = 0x800, scoped, tag = 'scratch operand']
  #allocation5 [shape = 'f32[4,1]{1,0:T(4,128)}', space=vmem, size = 0x800, scoped, tag = 'scratch operand']
  %s0 = inlined_call_operand.hbm [shape: f32[4,32], index: 0, kind: input, shape index: {}]
  %s1 = inlined_call_operand.hbm [shape: f32[4,32], index: 1, kind: input, shape index: {}]
  %s2 = inlined_call_operand.vmem [shape: f32[4,32], index: 2, kind: input, shape index: {}]
  %s3 = inlined_call_operand.vmem [shape: f32[4,32], index: 3, kind: input, shape index: {}]
  %s4 = inlined_call_operand.hbm [shape: f32[1,1], index: 4, kind: output, shape index: {}]
  %s5 = sld [smem:[#allocation0]]
  $region46: #{tpu_custom_call.1} parent=0
    _
  %s7 = ssub.s32 1, %s5
  %s8 = scalar_select 0, %s7, %s5
  $region1: #{tpu_custom_call.1} parent=0
    #allocation6 [shape = 'u8[2048]{0}', space=vmem, size = 0x800, scoped, tag = 'input window, operand 0, single buffered']
    #allocation7 [shape = 's32[1]{0}', space=sflag, size = 0x4, scoped, tag = 'scoped memory for tpu_custom_call.1']
    #allocation8 [shape = 's32[1]{0}', space=sflag, size = 0x4, scoped, tag = 'scoped memory for tpu_custom_call.1']
    #allocation9 [shape = 'u8[2048]{0}', space=vmem, size = 0x800, scoped, tag = 'input window, operand 1, single buffered']
    #allocation10 [shape = 's32[1]{0}', space=sflag, size = 0x4, scoped, tag = 'scoped memory for tpu_custom_call.1']
    #allocation11 [shape = 'u8[512]{0}', space=smem, size = 0x200, scoped, tag = 'output window, operand 0, single buffered']
    %9 = vsyncpa [#allocation7], 0
    %10 = vsyncpa [#allocation10], 0
    %11 = vsyncpa [#allocation8], 0
    // Predicated region
    $region2: #{tpu_custom_call.1} parent=1 // pred_check
      _
    $region3: #{tpu_custom_call.1} parent=1 // pred_check_branch
      %13 = sbr.rel (0) target = $region5
    $region4: #{tpu_custom_call.1} parent=1 // pred_region
      %s15 = ssub.s32 64, 64
      %16 = vsyncadd [#allocation7], %s15
      %s18 = sshll.u32 [#allocation6], 4
      %s19 = int_to_ptr.vmem [resolvable:$true] %s18
      %21 = dma.hbm_to_vmem [thread:$0]  %s0, 64, %s19, [#allocation7]
    $region5: #{tpu_custom_call.1} parent=1 // pred_fallthru
      _
    // Predicated region
    $region6: #{tpu_custom_call.1} parent=1 // pred_check
      _
    $region7: #{tpu_custom_call.1} parent=1 // pred_check_branch
      %23 = sbr.rel (0) target = $region9
    $region8: #{tpu_custom_call.1} parent=1 // pred_region
      %s25 = ssub.s32 64, 64
      %26 = vsyncadd [#allocation10], %s25
      %s28 = sshll.u32 [#allocation9], 4
      %s29 = int_to_ptr.vmem [resolvable:$true] %s28
      %31 = dma.hbm_to_vmem [thread:$0]  %s1, 64, %s29, [#allocation10]
    $region9: #{tpu_custom_call.1} parent=1 // pred_fallthru
      _
    // Predicated region
    $region10: #{tpu_custom_call.1} parent=1 // pred_check
      _
    $region11: #{tpu_custom_call.1} parent=1 // pred_check_branch
      %33 = sbr.rel (0) target = $region13
    $region12: #{tpu_custom_call.1} parent=1 // pred_region
      _
    $region13: #{tpu_custom_call.1} parent=1 // pred_fallthru
      _
    // Predicated region
    $region14: #{tpu_custom_call.1} parent=1 // pred_check
      _
    $region15: #{tpu_custom_call.1} parent=1 // pred_check_branch
      %35 = sbr.rel (0) target = $region17
    $region16: #{tpu_custom_call.1} parent=1 // pred_region
      _
    $region17: #{tpu_custom_call.1} parent=1 // pred_fallthru
      _
    // Predicated region
    $region18: #{tpu_custom_call.1} parent=1 // pred_check
      _
    $region19: #{tpu_custom_call.1} parent=1 // pred_check_branch
      %37 = sbr.rel (0) target = $region21
    $region20: #{tpu_custom_call.1} parent=1 // pred_region
      %38 = dma.done [#allocation7], 64
    $region21: #{tpu_custom_call.1} parent=1 // pred_fallthru
      _
    // Predicated region
    $region22: #{tpu_custom_call.1} parent=1 // pred_check
      _
    $region23: #{tpu_custom_call.1} parent=1 // pred_check_branch
      %40 = sbr.rel (0) target = $region25
    $region24: #{tpu_custom_call.1} parent=1 // pred_region
      %41 = dma.done [#allocation10], 64
    $region25: #{tpu_custom_call.1} parent=1 // pred_fallthru
      _
    %p42 = scmp.eq.s32.totalorder 0, 0
    // Predicated region
    $region26: #{tpu_custom_call.1} parent=1 // pred_check
      %p43 = pneg %p42
    $region27: #{tpu_custom_call.1} parent=1 // pred_check_branch
      %45 = sbr.rel (%p43) target = $region29
    $region28: #{tpu_custom_call.1} parent=1 // pred_region
      %v46 = vld [vmem:[#allocation6] sm:$0xf]
      %v47 = vmul.f32 %v46, %v46
      %vm48 = vcmask 257024
      %v49 = vsel %vm48, %v47, 0.0
      %50 = vadd.xlane.f32.xlu0 %v49
      %v51 = vpop.xlane.xlu0 %50
      %v52 = vmax.f32 %v51, 1e-16
      %v53 = vrsqrt.pop %v52
      %v54 = vmul.f32 %v46, %v53
      %55 = vst.msk [vmem:[#allocation2] sm:$0xf] %vm48, %v54
      %v56 = vld [vmem:[#allocation9] sm:$0xf]
      %v57 = vmul.f32 %v56, %v56
      %v58 = vsel %vm48, %v57, 0.0
      %59 = vadd.xlane.f32.xlu0 %v58
      %v60 = vpop.xlane.xlu0 %59
      %v61 = vmax.f32 %v60, 1e-16
      %v62 = vrsqrt.pop %v61
      %v63 = vmul.f32 %v56, %v62
      %64 = vst.msk [vmem:[#allocation3] sm:$0xf] %vm48, %v63
      %vm65 = vcmask 3072
      %66 = vst.msk [vmem:[#allocation4] sm:$0xf] %vm65, 0.0
      %67 = vst.msk [vmem:[#allocation5] sm:$0xf] %vm65, 0.0
    $region29: #{tpu_custom_call.1} parent=1 // pred_fallthru
      _
    %p68 = scmp.eq.s32.totalorder 0, 0
    %p69 = pnand %p68, %p42
    %p70 = pneg %p69
    // Predicated region
    $region30: #{tpu_custom_call.1} parent=1 // pred_check
      _
    $region31: #{tpu_custom_call.1} parent=1 // pred_check_branch
      %72 = sbr.rel (%p69) target = $region33
    $region32: #{tpu_custom_call.1} parent=1 // pred_region
      %s73 = scalar_lea.smem [#allocation11], 0
      %74 = sst [smem:[%s73]] 0.0
    $region33: #{tpu_custom_call.1} parent=1 // pred_fallthru
      _
    %v75 = vld [vmem:[%s2] sm:$0xf]
    %v76 = vmul.f32 %v75, %v75
    %vm77 = vcmask 257024
    %v78 = vsel %vm77, %v76, 0.0
    %79 = vadd.xlane.f32.xlu0 %v78
    %v80 = vpop.xlane.xlu0 %79
    %v81 = vmax.f32 %v80, 1e-16
    %v82 = vrsqrt.pop %v81
    %v83 = vmul.f32 %v75, %v82
    %v84 = vld [vmem:[%s3] sm:$0xf]
    %v85 = vmul.f32 %v84, %v84
    %v86 = vsel %vm77, %v85, 0.0
    %87 = vadd.xlane.f32.xlu0 %v86
    %v88 = vpop.xlane.xlu0 %87
    %v89 = vmax.f32 %v88, 1e-16
    %v90 = vrsqrt.pop %v89
    %v91 = vmul.f32 %v84, %v90
    %v92 = vld [vmem:[#allocation2] sm:$0xf]
    %v93 = vld [vmem:[#allocation3] sm:$0xf]
    %vm94 = vcmask 261120
    %v96 = vsel %vm94, %v92, 0
    %v99 = vsel %vm94, %v83, 0
    %101 = vmatprep.subr.mxu0 0.0
    %102 = vmatpush1.xpose.msra.mxu0 %v99
    %103 = vmatprep.subr.mxu0 0.0
    %104 = vmatpush1.xpose.msra.mxu0 0.0
    %105 = vmatprep.subr.mxu0 0.0
    %106 = vmatpush1.xpose.msra.mxu0 0.0
    %107 = vmatprep.subr.mxu0 0.0
    %108 = vmatpush1.xpose.msra.mxu0 0.0
    %109 = vmatprep.subr.mxu0 0.0
    %110 = vmatpush1.xpose.msra.mxu0 0.0
    %111 = vmatprep.subr.mxu0 0.0
    %112 = vmatpush1.xpose.msra.mxu0 0.0
    %113 = vmatprep.subr.mxu0 0.0
    %114 = vmatpush1.xpose.msra.mxu0 0.0
    %115 = vmatprep.subr.mxu0 0.0
    %116 = vmatpush1.xpose.msra.mxu0 0.0
    %117 = vmatprep.subr.mxu0 0.0
    %118 = vmatpush1.xpose.msra.mxu0 0.0
    %119 = vmatprep.subr.mxu0 0.0
    %120 = vmatpush1.xpose.msra.mxu0 0.0
    %121 = vmatprep.subr.mxu0 0.0
    %122 = vmatpush1.xpose.msra.mxu0 0.0
    %123 = vmatprep.subr.mxu0 0.0
    %124 = vmatpush1.xpose.msra.mxu0 0.0
    %125 = vmatprep.subr.mxu0 0.0
    %126 = vmatpush1.xpose.msra.mxu0 0.0
    %127 = vmatprep.subr.mxu0 0.0
    %128 = vmatpush1.xpose.msra.mxu0 0.0
    %129 = vmatprep.subr.mxu0 0.0
    %130 = vmatpush1.xpose.msra.mxu0 0.0
    %131 = vmatprep.subr.mxu0 0.0
    %132 = vmatpush1.xpose.msra.mxu0 0.0
    %133 = vmatprep.subr.mxu0 0.0
    %134 = vmatpush1.xpose.msra.mxu0 0.0
    %135 = vmatprep.subr.mxu0 0.0
    %136 = vmatpush1.xpose.msra.mxu0 0.0
    %137 = vmatprep.subr.mxu0 0.0
    %138 = vmatpush1.xpose.msra.mxu0 0.0
    %139 = vmatprep.subr.mxu0 0.0
    %140 = vmatpush1.xpose.msra.mxu0 0.0
    %141 = vmatprep.subr.mxu0 0.0
    %142 = vmatpush1.xpose.msra.mxu0 0.0
    %143 = vmatprep.subr.mxu0 0.0
    %144 = vmatpush1.xpose.msra.mxu0 0.0
    %145 = vmatprep.subr.mxu0 0.0
    %146 = vmatpush1.xpose.msra.mxu0 0.0
    %147 = vmatprep.subr.mxu0 0.0
    %148 = vmatpush1.xpose.msra.mxu0 0.0
    %149 = vmatprep.subr.mxu0 0.0
    %150 = vmatpush1.xpose.msra.mxu0 0.0
    %151 = vmatprep.subr.mxu0 0.0
    %152 = vmatpush1.xpose.msra.mxu0 0.0
    %153 = vmatprep.subr.mxu0 0.0
    %154 = vmatpush1.xpose.msra.mxu0 0.0
    %155 = vmatprep.subr.mxu0 0.0
    %156 = vmatpush1.xpose.msra.mxu0 0.0
    %157 = vmatprep.subr.mxu0 0.0
    %158 = vmatpush1.xpose.msra.mxu0 0.0
    %159 = vmatprep.subr.mxu0 0.0
    %160 = vmatpush1.xpose.msra.mxu0 0.0
    %161 = vmatprep.subr.mxu0 0.0
    %162 = vmatpush1.xpose.msra.mxu0 0.0
    %163 = vmatprep.subr.mxu0 0.0
    %164 = vmatpush1.xpose.msra.mxu0 0.0
    %165 = vmatprep.mubr.f32.mxu0 0.0
    %166 = vmatmul.mubr.f32.gmra.mrb[0].mxu0 %v96
    %v167 = vpop.f32.mrb[0].mxu0
    %v168 = vadd.f32 0.0, %v167
    %v169 = vpop.f32.mrb[0].mxu0
    %170 = vdwg.mxu0
    %v172 = vsel %vm94, %v91, 0
    %174 = vmatprep.subr.mxu0 0.0
    %175 = vmatpush1.xpose.msra.mxu0 %v172
    %176 = vmatprep.subr.mxu0 0.0
    %177 = vmatpush1.xpose.msra.mxu0 0.0
    %178 = vmatprep.subr.mxu0 0.0
    %179 = vmatpush1.xpose.msra.mxu0 0.0
    %180 = vmatprep.subr.mxu0 0.0
    %181 = vmatpush1.xpose.msra.mxu0 0.0
    %182 = vmatprep.subr.mxu0 0.0
    %183 = vmatpush1.xpose.msra.mxu0 0.0
    %184 = vmatprep.subr.mxu0 0.0
    %185 = vmatpush1.xpose.msra.mxu0 0.0
    %186 = vmatprep.subr.mxu0 0.0
    %187 = vmatpush1.xpose.msra.mxu0 0.0
    %188 = vmatprep.subr.mxu0 0.0
    %189 = vmatpush1.xpose.msra.mxu0 0.0
    %190 = vmatprep.subr.mxu0 0.0
    %191 = vmatpush1.xpose.msra.mxu0 0.0
    %192 = vmatprep.subr.mxu0 0.0
    %193 = vmatpush1.xpose.msra.mxu0 0.0
    %194 = vmatprep.subr.mxu0 0.0
    %195 = vmatpush1.xpose.msra.mxu0 0.0
    %196 = vmatprep.subr.mxu0 0.0
    %197 = vmatpush1.xpose.msra.mxu0 0.0
    %198 = vmatprep.subr.mxu0 0.0
    %199 = vmatpush1.xpose.msra.mxu0 0.0
    %200 = vmatprep.subr.mxu0 0.0
    %201 = vmatpush1.xpose.msra.mxu0 0.0
    %202 = vmatprep.subr.mxu0 0.0
    %203 = vmatpush1.xpose.msra.mxu0 0.0
    %204 = vmatprep.subr.mxu0 0.0
    %205 = vmatpush1.xpose.msra.mxu0 0.0
    %206 = vmatprep.subr.mxu0 0.0
    %207 = vmatpush1.xpose.msra.mxu0 0.0
    %208 = vmatprep.subr.mxu0 0.0
    %209 = vmatpush1.xpose.msra.mxu0 0.0
    %210 = vmatprep.subr.mxu0 0.0
    %211 = vmatpush1.xpose.msra.mxu0 0.0
    %212 = vmatprep.subr.mxu0 0.0
    %213 = vmatpush1.xpose.msra.mxu0 0.0
    %214 = vmatprep.subr.mxu0 0.0
    %215 = vmatpush1.xpose.msra.mxu0 0.0
    %216 = vmatprep.subr.mxu0 0.0
    %217 = vmatpush1.xpose.msra.mxu0 0.0
    %218 = vmatprep.subr.mxu0 0.0
    %219 = vmatpush1.xpose.msra.mxu0 0.0
    %220 = vmatprep.subr.mxu0 0.0
    %221 = vmatpush1.xpose.msra.mxu0 0.0
    %222 = vmatprep.subr.mxu0 0.0
    %223 = vmatpush1.xpose.msra.mxu0 0.0
    %224 = vmatprep.subr.mxu0 0.0
    %225 = vmatpush1.xpose.msra.mxu0 0.0
    %226 = vmatprep.subr.mxu0 0.0
    %227 = vmatpush1.xpose.msra.mxu0 0.0
    %228 = vmatprep.subr.mxu0 0.0
    %229 = vmatpush1.xpose.msra.mxu0 0.0
    %230 = vmatprep.subr.mxu0 0.0
    %231 = vmatpush1.xpose.msra.mxu0 0.0
    %232 = vmatprep.subr.mxu0 0.0
    %233 = vmatpush1.xpose.msra.mxu0 0.0
    %234 = vmatprep.subr.mxu0 0.0
    %235 = vmatpush1.xpose.msra.mxu0 0.0
    %236 = vmatprep.subr.mxu0 0.0
    %237 = vmatpush1.xpose.msra.mxu0 0.0
    %238 = vmatprep.mubr.f32.mxu0 0.0
    %239 = vmatmul.mubr.f32.gmra.mrb[0].mxu0 %v96
    %v240 = vpop.f32.mrb[0].mxu0
    %v241 = vadd.f32 0.0, %v240
    %v242 = vpop.f32.mrb[0].mxu0
    %243 = vdwg.mxu0
    %v245 = vsel %vm94, %v93, 0
    %247 = vmatprep.subr.mxu0 0.0
    %248 = vmatpush1.xpose.msra.mxu0 %v99
    %249 = vmatprep.subr.mxu0 0.0
    %250 = vmatpush1.xpose.msra.mxu0 0.0
    %251 = vmatprep.subr.mxu0 0.0
    %252 = vmatpush1.xpose.msra.mxu0 0.0
    %253 = vmatprep.subr.mxu0 0.0
    %254 = vmatpush1.xpose.msra.mxu0 0.0
    %255 = vmatprep.subr.mxu0 0.0
    %256 = vmatpush1.xpose.msra.mxu0 0.0
    %257 = vmatprep.subr.mxu0 0.0
    %258 = vmatpush1.xpose.msra.mxu0 0.0
    %259 = vmatprep.subr.mxu0 0.0
    %260 = vmatpush1.xpose.msra.mxu0 0.0
    %261 = vmatprep.subr.mxu0 0.0
    %262 = vmatpush1.xpose.msra.mxu0 0.0
    %263 = vmatprep.subr.mxu0 0.0
    %264 = vmatpush1.xpose.msra.mxu0 0.0
    %265 = vmatprep.subr.mxu0 0.0
    %266 = vmatpush1.xpose.msra.mxu0 0.0
    %267 = vmatprep.subr.mxu0 0.0
    %268 = vmatpush1.xpose.msra.mxu0 0.0
    %269 = vmatprep.subr.mxu0 0.0
    %270 = vmatpush1.xpose.msra.mxu0 0.0
    %271 = vmatprep.subr.mxu0 0.0
    %272 = vmatpush1.xpose.msra.mxu0 0.0
    %273 = vmatprep.subr.mxu0 0.0
    %274 = vmatpush1.xpose.msra.mxu0 0.0
    %275 = vmatprep.subr.mxu0 0.0
    %276 = vmatpush1.xpose.msra.mxu0 0.0
    %277 = vmatprep.subr.mxu0 0.0
    %278 = vmatpush1.xpose.msra.mxu0 0.0
    %279 = vmatprep.subr.mxu0 0.0
    %280 = vmatpush1.xpose.msra.mxu0 0.0
    %281 = vmatprep.subr.mxu0 0.0
    %282 = vmatpush1.xpose.msra.mxu0 0.0
    %283 = vmatprep.subr.mxu0 0.0
    %284 = vmatpush1.xpose.msra.mxu0 0.0
    %285 = vmatprep.subr.mxu0 0.0
    %286 = vmatpush1.xpose.msra.mxu0 0.0
    %287 = vmatprep.subr.mxu0 0.0
    %288 = vmatpush1.xpose.msra.mxu0 0.0
    %289 = vmatprep.subr.mxu0 0.0
    %290 = vmatpush1.xpose.msra.mxu0 0.0
    %291 = vmatprep.subr.mxu0 0.0
    %292 = vmatpush1.xpose.msra.mxu0 0.0
    %293 = vmatprep.subr.mxu0 0.0
    %294 = vmatpush1.xpose.msra.mxu0 0.0
    %295 = vmatprep.subr.mxu0 0.0
    %296 = vmatpush1.xpose.msra.mxu0 0.0
    %297 = vmatprep.subr.mxu0 0.0
    %298 = vmatpush1.xpose.msra.mxu0 0.0
    %299 = vmatprep.subr.mxu0 0.0
    %300 = vmatpush1.xpose.msra.mxu0 0.0
    %301 = vmatprep.subr.mxu0 0.0
    %302 = vmatpush1.xpose.msra.mxu0 0.0
    %303 = vmatprep.subr.mxu0 0.0
    %304 = vmatpush1.xpose.msra.mxu0 0.0
    %305 = vmatprep.subr.mxu0 0.0
    %306 = vmatpush1.xpose.msra.mxu0 0.0
    %307 = vmatprep.subr.mxu0 0.0
    %308 = vmatpush1.xpose.msra.mxu0 0.0
    %309 = vmatprep.subr.mxu0 0.0
    %310 = vmatpush1.xpose.msra.mxu0 0.0
    %311 = vmatprep.mubr.f32.mxu0 0.0
    %312 = vmatmul.mubr.f32.gmra.mrb[0].mxu0 %v245
    %v313 = vpop.f32.mrb[0].mxu0
    %v314 = vadd.f32 0.0, %v313
    %v315 = vpop.f32.mrb[0].mxu0
    %316 = vdwg.mxu0
    %317 = vmatprep.subr.mxu0 0.0
    %318 = vmatpush1.xpose.msra.mxu0 %v172
    %319 = vmatprep.subr.mxu0 0.0
    %320 = vmatpush1.xpose.msra.mxu0 0.0
    %321 = vmatprep.subr.mxu0 0.0
    %322 = vmatpush1.xpose.msra.mxu0 0.0
    %323 = vmatprep.subr.mxu0 0.0
    %324 = vmatpush1.xpose.msra.mxu0 0.0
    %325 = vmatprep.subr.mxu0 0.0
    %326 = vmatpush1.xpose.msra.mxu0 0.0
    %327 = vmatprep.subr.mxu0 0.0
    %328 = vmatpush1.xpose.msra.mxu0 0.0
    %329 = vmatprep.subr.mxu0 0.0
    %330 = vmatpush1.xpose.msra.mxu0 0.0
    %331 = vmatprep.subr.mxu0 0.0
    %332 = vmatpush1.xpose.msra.mxu0 0.0
    %333 = vmatprep.subr.mxu0 0.0
    %334 = vmatpush1.xpose.msra.mxu0 0.0
    %335 = vmatprep.subr.mxu0 0.0
    %336 = vmatpush1.xpose.msra.mxu0 0.0
    %337 = vmatprep.subr.mxu0 0.0
    %338 = vmatpush1.xpose.msra.mxu0 0.0
    %339 = vmatprep.subr.mxu0 0.0
    %340 = vmatpush1.xpose.msra.mxu0 0.0
    %341 = vmatprep.subr.mxu0 0.0
    %342 = vmatpush1.xpose.msra.mxu0 0.0
    %343 = vmatprep.subr.mxu0 0.0
    %344 = vmatpush1.xpose.msra.mxu0 0.0
    %345 = vmatprep.subr.mxu0 0.0
    %346 = vmatpush1.xpose.msra.mxu0 0.0
    %347 = vmatprep.subr.mxu0 0.0
    %348 = vmatpush1.xpose.msra.mxu0 0.0
    %349 = vmatprep.subr.mxu0 0.0
    %350 = vmatpush1.xpose.msra.mxu0 0.0
    %351 = vmatprep.subr.mxu0 0.0
    %352 = vmatpush1.xpose.msra.mxu0 0.0
    %353 = vmatprep.subr.mxu0 0.0
    %354 = vmatpush1.xpose.msra.mxu0 0.0
    %355 = vmatprep.subr.mxu0 0.0
    %356 = vmatpush1.xpose.msra.mxu0 0.0
    %357 = vmatprep.subr.mxu0 0.0
    %358 = vmatpush1.xpose.msra.mxu0 0.0
    %359 = vmatprep.subr.mxu0 0.0
    %360 = vmatpush1.xpose.msra.mxu0 0.0
    %361 = vmatprep.subr.mxu0 0.0
    %362 = vmatpush1.xpose.msra.mxu0 0.0
    %363 = vmatprep.subr.mxu0 0.0
    %364 = vmatpush1.xpose.msra.mxu0 0.0
    %365 = vmatprep.subr.mxu0 0.0
    %366 = vmatpush1.xpose.msra.mxu0 0.0
    %367 = vmatprep.subr.mxu0 0.0
    %368 = vmatpush1.xpose.msra.mxu0 0.0
    %369 = vmatprep.subr.mxu0 0.0
    %370 = vmatpush1.xpose.msra.mxu0 0.0
    %371 = vmatprep.subr.mxu0 0.0
    %372 = vmatpush1.xpose.msra.mxu0 0.0
    %373 = vmatprep.subr.mxu0 0.0
    %374 = vmatpush1.xpose.msra.mxu0 0.0
    %375 = vmatprep.subr.mxu0 0.0
    %376 = vmatpush1.xpose.msra.mxu0 0.0
    %377 = vmatprep.subr.mxu0 0.0
    %378 = vmatpush1.xpose.msra.mxu0 0.0
    %379 = vmatprep.subr.mxu0 0.0
    %380 = vmatpush1.xpose.msra.mxu0 0.0
    %381 = vmatprep.mubr.f32.mxu0 0.0
    %382 = vmatmul.mubr.f32.gmra.mrb[0].mxu0 %v245
    %v383 = vpop.f32.mrb[0].mxu0
    %v384 = vadd.f32 0.0, %v383
    %v385 = vpop.f32.mrb[0].mxu0
    %386 = vdwg.mxu0
    %v387 = vld [vmem:[#allocation4] sm:$0xf]
    %v388 = vmul.f32 %v168, 1.442695
    %v389 = vpow.pop %v388
    %vm390 = vcmask 27648
    %v391 = vsel %vm390, %v389, 0.0
    %392 = vadd.xlane.f32.xlu0 %v391
    %v393 = vpop.xlane.xlu0 %392
    %v394 = vmul.f32 %v241, 1.442695
    %v395 = vpow.pop %v394
    %v396 = vsel %vm390, %v395, 0.0
    %397 = vadd.xlane.f32.xlu0 %v396
    %v398 = vpop.xlane.xlu0 %397
    %v399 = vadd.f32 %v393, %v398
    %v400 = vadd.f32 %v387, %v399
    %vm401 = vcmask 3072
    %402 = vst.msk [vmem:[#allocation4] sm:$0xf] %vm401, %v400
    %v403 = vld [vmem:[#allocation5] sm:$0xf]
    %v404 = vmul.f32 %v314, 1.442695
    %v405 = vpow.pop %v404
    %v406 = vsel %vm390, %v405, 0.0
    %407 = vadd.xlane.f32.xlu0 %v406
    %v408 = vpop.xlane.xlu0 %407
    %v409 = vmul.f32 %v384, 1.442695
    %v410 = vpow.pop %v409
    %v411 = vsel %vm390, %v410, 0.0
    %412 = vadd.xlane.f32.xlu0 %v411
    %v413 = vpop.xlane.xlu0 %412
    %v414 = vadd.f32 %v408, %v413
    %v415 = vadd.f32 %v403, %v414
    %416 = vst.msk [vmem:[#allocation5] sm:$0xf] %vm401, %v415
    // Predicated region
    $region34: #{tpu_custom_call.1} parent=1 // pred_check
      %p417 = pneg %p42
    $region35: #{tpu_custom_call.1} parent=1 // pred_check_branch
      %419 = sbr.rel (%p417) target = $region37
    $region36: #{tpu_custom_call.1} parent=1 // pred_region
      %v420 = vld [vmem:[#allocation2] sm:$0xf]
      %v421 = vld [vmem:[#allocation3] sm:$0xf]
      %v422 = vmul.f32 %v420, %v420
      %v423 = vsel %vm77, %v422, 0.0
      %424 = vadd.xlane.f32.xlu0 %v423
      %v425 = vpop.xlane.xlu0 %424
      %v426 = vmul.f32 %v421, %v421
      %v427 = vsel %vm77, %v426, 0.0
      %428 = vadd.xlane.f32.xlu0 %v427
      %v429 = vpop.xlane.xlu0 %428
      %v430 = vmul.f32 %v420, %v421
      %v431 = vsel %vm77, %v430, 0.0
      %432 = vadd.xlane.f32.xlu0 %v431
      %v433 = vpop.xlane.xlu0 %432
      %v434 = vld [vmem:[#allocation4] sm:$0xf]
      %v435 = vmul.f32 %v425, 1.442695
      %v436 = vpow.pop %v435
      %v437 = vsub.f32 %v434, %v436
      %v438 = vlog2.pop %v437
      %v439 = vmul.f32 %v438, 0.6931472
      %v440 = vsub.f32 %v439, %v433
      %v441 = vld [vmem:[#allocation5] sm:$0xf]
      %v442 = vmul.f32 %v429, 1.442695
      %v443 = vpow.pop %v442
      %v444 = vsub.f32 %v441, %v443
      %v445 = vlog2.pop %v444
      %v446 = vmul.f32 %v445, 0.6931472
      %v447 = vsub.f32 %v446, %v433
      %s448 = sld [smem:[#allocation11]]
      %v449 = vsel %vm401, %v440, 0.0
      %450 = vadd.xlane.f32.xlu0 %v449
      %v451 = vpop.xlane.xlu0 %450
      %v452 = vrot.slane %v451, 4
      %v453 = vadd.f32 %v451, %v452
      %v454 = vrot.slane %v453, 2
      %v455 = vadd.f32 %v453, %v454
      %v456 = vrot.slane %v455, 1
      %v457 = vadd.f32 %v455, %v456
      %s458 = vtos %v457
      %v459 = vsel %vm401, %v447, 0.0
      %460 = vadd.xlane.f32.xlu0 %v459
      %v461 = vpop.xlane.xlu0 %460
      %v462 = vrot.slane %v461, 4
      %v463 = vadd.f32 %v461, %v462
      %v464 = vrot.slane %v463, 2
      %v465 = vadd.f32 %v463, %v464
      %v466 = vrot.slane %v465, 1
      %v467 = vadd.f32 %v465, %v466
      %s468 = vtos %v467
      %s469 = sadd.f32 %s458, %s468
      %s470 = sadd.f32 %s448, %s469
      %s471 = scalar_lea.smem [#allocation11], 0
      %472 = sst [smem:[%s471]] %s470
    $region37: #{tpu_custom_call.1} parent=1 // pred_fallthru
      _
    // Predicated region
    $region38: #{tpu_custom_call.1} parent=1 // pred_check
      _
    $region39: #{tpu_custom_call.1} parent=1 // pred_check_branch
      %474 = sbr.rel (0) target = $region41
    $region40: #{tpu_custom_call.1} parent=1 // pred_region
      %s476 = ssub.s32 16, 16
      %477 = vsyncadd [#allocation8], %s476
      %480 = dma.smem_to_hbm [#allocation11], 16, %s4, [#allocation8]
    $region41: #{tpu_custom_call.1} parent=1 // pred_fallthru
      _
    // Predicated region
    $region42: #{tpu_custom_call.1} parent=1 // pred_check
      _
    $region43: #{tpu_custom_call.1} parent=1 // pred_check_branch
      %482 = sbr.rel (0) target = $region45
    $region44: #{tpu_custom_call.1} parent=1 // pred_region
      %483 = dma.done [#allocation8], 16
    $region45: #{tpu_custom_call.1} parent=1 // pred_fallthru
      _
    %484 = sfence
    %485 = vsyncpa [#allocation7], 1
    %486 = vsyncpa [#allocation10], 1
    %487 = vsyncpa [#allocation8], 1

</llo_original>
